<compile_context>
chip_gen: v6e
topology: v6e:2x2x1
jax: 0.10.0
libtpu: 0.0.40
codegen_flags: <defaults>
</compile_context>

<pallas_src>
import jax
import jax.numpy as jnp
from jax.experimental import pallas as pl
from jax.experimental.pallas import tpu as pltpu


# At most this many outstanding DMA descriptors per copy.
_MAX_CHUNKS = 8
# Don't bother splitting below this per-chunk size (DMA setup would dominate).
_MIN_CHUNK_BYTES = 512 * 1024


def identity(x: jnp.ndarray) -> jnp.ndarray:
    """Identity.forward(x) == x.  No kernel: zero HBM traffic, zero cost."""
    return x


def _chunk_plan(shape, nbytes):
    """Static (start, size) chunks along axis 0, or None for a whole-ref DMA."""
    if len(shape) == 0:
        return None
    d0 = shape[0]
    nc = int(min(_MAX_CHUNKS, d0, max(1, nbytes // _MIN_CHUNK_BYTES)))
    if nc <= 1:
        return None
    chunks = []
    for i in range(nc):
        s = (i * d0) // nc
        e = ((i + 1) * d0) // nc
        if e > s:
            chunks.append((s, e - s))
    return chunks if len(chunks) > 1 else None


def identity_pallas(x: jnp.ndarray) -> jnp.ndarray:
    """Freshly materialized copy of x via direct HBM->HBM DMA.

    Only for when a new output buffer is explicitly required; for the
    module's semantics prefer `identity`, which returns x directly.
    """
    if x.size == 0:
        return x

    itemsize = jnp.dtype(x.dtype).itemsize
    nbytes = x.size * itemsize
    chunks = _chunk_plan(x.shape, nbytes)
    n_sems = len(chunks) if chunks is not None else 1

    def kernel(x_ref, o_ref, sem):
        if chunks is None:
            cp = pltpu.make_async_copy(x_ref, o_ref, sem.at[0])
            cp.start()
            cp.wait()
        else:
            cps = [
                pltpu.make_async_copy(
                    x_ref.at[pl.ds(start, size)],
                    o_ref.at[pl.ds(start, size)],
                    sem.at[i],
                )
                for i, (start, size) in enumerate(chunks)
            ]
            # Issue every DMA before waiting on any: multiple outstanding
            # descriptors keep the HBM pipe full (v7x especially).
            for cp in cps:
                cp.start()
            for cp in cps:
                cp.wait()

    return pl.pallas_call(
        kernel,
        out_shape=jax.ShapeDtypeStruct(x.shape, x.dtype),
        in_specs=[pl.BlockSpec(memory_space=pl.ANY)],
        out_specs=pl.BlockSpec(memory_space=pl.ANY),
        scratch_shapes=[pltpu.SemaphoreType.DMA((n_sems,))],
        compiler_params=pltpu.CompilerParams(has_side_effects=True),
        cost_estimate=pl.CostEstimate(
            flops=0, transcendentals=0, bytes_accessed=2 * nbytes
        ),
    )(x)


if __name__ == "__main__":
    key = jax.random.PRNGKey(0)
    k0, k1 = jax.random.split(key)

    # Small NCHW-like input consistent with a conv-net context.
    x = jax.random.normal(k0, (2, 4, 16, 16), dtype=jnp.float32)

    # Zero-cost true identity (the module's semantics).
    y_fast = identity(x)
    assert y_fast is x

    # Single-descriptor DMA path (tiny array).
    y = identity_pallas(x)
    jax.block_until_ready(y)
    assert y.shape == x.shape, (y.shape, x.shape)
    assert y.dtype == x.dtype, (y.dtype, x.dtype)
    assert bool(jnp.all(y == x)), "identity output mismatch (small)"

    # Multi-chunk DMA path (large enough to split into several descriptors).
    xb = jax.random.normal(k1, (8, 128, 1024), dtype=jnp.float32)  # 4 MiB
    yb = identity_pallas(xb)
    jax.block_until_ready(yb)
    assert yb.shape == xb.shape and yb.dtype == xb.dtype
    assert bool(jnp.all(yb == xb)), "identity output mismatch (chunked)"

    print("KERNEL_OK")
</pallas_src>

<mosaic_0001>
module attributes {stable_mosaic.version = 11 : i64} {
  func.func @kernel(%arg0: memref<2x4x16x16xf32, #tpu.memory_space<any>>, %arg1: memref<2x4x16x16xf32, #tpu.memory_space<any>>, %arg2: memref<1x!tpu.dma_semaphore, #tpu.memory_space<semaphore_mem>>) attributes {dimension_semantics = [], scalar_prefetch = 0 : i64, scratch_operands = 1 : i64, tpu.core_type = #tpu.core_type<tc>} {
    %c0_i32 = arith.constant 0 : i32
    %0 = tpu.memref_slice %arg2[%c0_i32] : memref<1x!tpu.dma_semaphore, #tpu.memory_space<semaphore_mem>> -> memref<1x!tpu.dma_semaphore, #tpu.memory_space<semaphore_mem>>
    %1 = tpu.memref_squeeze %0 : memref<1x!tpu.dma_semaphore, #tpu.memory_space<semaphore_mem>> -> memref<!tpu.dma_semaphore, #tpu.memory_space<semaphore_mem>>
    tpu.enqueue_dma source(%arg0 : memref<2x4x16x16xf32, #tpu.memory_space<any>>) target(%arg1 : memref<2x4x16x16xf32, #tpu.memory_space<any>>) target_semaphore(%1 : memref<!tpu.dma_semaphore, #tpu.memory_space<semaphore_mem>>)
    %c0_i32_0 = arith.constant 0 : i32
    %2 = tpu.memref_slice %arg2[%c0_i32_0] : memref<1x!tpu.dma_semaphore, #tpu.memory_space<semaphore_mem>> -> memref<1x!tpu.dma_semaphore, #tpu.memory_space<semaphore_mem>>
    %3 = tpu.memref_squeeze %2 : memref<1x!tpu.dma_semaphore, #tpu.memory_space<semaphore_mem>> -> memref<!tpu.dma_semaphore, #tpu.memory_space<semaphore_mem>>
    tpu.wait_dma2 semaphore(%3 : memref<!tpu.dma_semaphore, #tpu.memory_space<semaphore_mem>>) src(%arg0 : memref<2x4x16x16xf32, #tpu.memory_space<any>>) dst(%arg1 : memref<2x4x16x16xf32, #tpu.memory_space<any>>)
    return
  }
}

</mosaic_0001>

<llo_original>
// kernel: tpu_custom_call.1
$region0: #{tpu_custom_call.1}
  #allocation0 [shape = 'u32[]', space=smem, size = 0x4, offset = 0x4, fixed_abs, tag = 'smem constant byte address 0x4 - core index']
  #allocation1 [shape = 'u32[144,128]{1,0:T(1,128)}', space=vmem, size = 0x12000, scoped, tag = 'internal scratch']
  #allocation2 [shape = 's32[1]{0}', space=sflag, size = 0x4, scoped, tag = 'scratch operand']
  #allocation3 [shape = 's32[]', space=sflag, size = 0x4, offset = 0, fixed_abs, tag = 'sflag constant byte address 0x0 - dummy sync flag']
  #allocation4 [shape = 'u32[0]{0}', space=smem, size = 0, offset = 0, fixed_abs, tag = 'smem constant byte address 0x0 - null']
  %s0 = inlined_call_operand.hbm [shape: f32[2,4,16,16], index: 0, kind: input, shape index: {}]
  %s1 = inlined_call_operand.hbm [shape: f32[2,4,16,16], index: 1, kind: output, shape index: {}]
  %s2 = sld [smem:[#allocation0]]
  $region2: #{tpu_custom_call.1} parent=0
    _
  %s4 = ssub.s32 1, %s2
  %s5 = scalar_select 0, %s4, %s2
  %s7 = sshll.u32 1, 14
  %s8 = sxor.u32 4294967295, %s7
  %12 = dma.general %s0, 2048, %s1, [#allocation2], 131072, [#allocation4], 0, 0
  %s13 = smul.u32 2, 4
  %s14 = smul.u32 %s13, 16
  %s15 = smul.u32 %s14, 1
  %s16 = sshll.u32 %s15, 4
  %17 = dma.done [#allocation2], %s16
  %18 = vsyncmov [#allocation2]
  %s19 = vpop.sfrf %18
  %p20 = scmp.eq.s32.totalorder %s19, 0
  %p21 = pneg %p20
  %23 = shalt.err (%p21)

</llo_original>
